<compile_context>
chip_gen: v7x
topology: tpu7x:2x2x1
jax: 0.10.0
libtpu: 0.0.40
codegen_flags: <defaults>
</compile_context>

<pallas_src>
import jax
import jax.numpy as jnp
from jax.experimental import pallas as pl
from jax.experimental.pallas import tpu as pltpu

DATA_DIM = 8          # synthetic choice for the global `data_dim`
FEA = 8               # mlp output width
HID = 32              # hidden width
NEG_SLOPE = 0.01      # nn.LeakyReLU default negative_slope

# ---- packed-parameter slab offsets (all row starts 8-aligned) ----
_W8_W0 = 0            # rows  0:32   mlp Linear(7,32) weight, padded to [32,8]
_W8_WD0I = 32         # rows 32:64   D Linear(16,32) weight cols 8:16 (img part)
_W8_HEAD = 64         # rows 64:97   [D Linear fea-part (32,8) ; fc weight (1,8)]
_W8_ROWS = 104

_W32_W1 = 0           # rows  0:8    mlp Linear(32,8) weight
_W32_WD1 = 8          # rows  8:40   D Linear(32,32) weight
_W32_WD2 = 40         # rows 40:41   D Linear(32,1) weight
_W32_ROWS = 48

_B_B0 = 0             # rows  0:32   mlp bias 0
_B_B1 = 32            # rows 32:40   mlp bias 1
_B_BD1 = 40           # rows 40:72   D bias 1
_B_BD2 = 72           # rows 72:73   D bias 2
_B_HEAD = 80          # rows 80:113  [D bias 0 ; fc bias]
_B_ROWS = 120


def _leaky_relu(x):
    return jnp.where(x > 0, x, NEG_SLOPE * x)


def _round_up(x, m):
    return ((x + m - 1) // m) * m


def discriminator_kernel(img_ref, w8_ref, w32_ref, b_ref, x_ref, y_ref):
    x0 = img_ref[...]                                   # [DATA_DIM, tile]

    def dot(a, b):
        return jnp.dot(a, b, preferred_element_type=jnp.float32)

    # ---- self.mlp ----
    h = _leaky_relu(dot(w8_ref[_W8_W0:_W8_W0 + HID, :], x0)
                    + b_ref[_B_B0:_B_B0 + HID, :])                 # [32, tile]
    fea = _leaky_relu(dot(w32_ref[_W32_W1:_W32_W1 + FEA, :], h)
                      + b_ref[_B_B1:_B_B1 + FEA, :])               # [8, tile]

    # ---- fused head: self.fc + fea-part of self.D's first Linear ----
    head = (dot(w8_ref[_W8_HEAD:_W8_HEAD + HID + 1, :], fea)
            + b_ref[_B_HEAD:_B_HEAD + HID + 1, :])                 # [33, tile]
    y_ref[...] = head[HID:HID + 1, :]                              # y = fc(fea)

    # ---- rest of self.D (img part via split weight, no concat) ----
    d = _leaky_relu(head[:HID, :]
                    + dot(w8_ref[_W8_WD0I:_W8_WD0I + HID, :], x0))  # [32, tile]
    d = _leaky_relu(dot(w32_ref[_W32_WD1:_W32_WD1 + HID, :], d)
                    + b_ref[_B_BD1:_B_BD1 + HID, :])
    x_ref[...] = (dot(w32_ref[_W32_WD2:_W32_WD2 + 1, :], d)
                  + b_ref[_B_BD2:_B_BD2 + 1, :])                    # [1, tile]


def make_params(key):
    """PyTorch-Linear-style params: W is [out, in], b is [out]."""
    def linear(key, fan_in, fan_out):
        k1, k2 = jax.random.split(key)
        bound = 1.0 / jnp.sqrt(jnp.float32(fan_in))
        w = jax.random.uniform(k1, (fan_out, fan_in), jnp.float32, -bound, bound)
        b = jax.random.uniform(k2, (fan_out,), jnp.float32, -bound, bound)
        return w, b

    keys = jax.random.split(key, 6)
    w0, b0 = linear(keys[0], DATA_DIM - 1, HID)
    w1, b1 = linear(keys[1], HID, FEA)
    wf, bf = linear(keys[2], FEA, 1)
    wd0, bd0 = linear(keys[3], FEA + DATA_DIM, HID)
    wd1, bd1 = linear(keys[4], HID, HID)
    wd2, bd2 = linear(keys[5], HID, 1)
    return dict(w0=w0, b0=b0, w1=w1, b1=b1, wf=wf, bf=bf,
                wd0=wd0, bd0=bd0, wd1=wd1, bd1=bd1, wd2=wd2, bd2=bd2)


def pack_params(p):
    """Pack the 13 logical tensors into 3 kernel slabs."""
    # mlp first layer: pad unused input column 7 with zeros so the kernel can
    # multiply the full img (zero kills the last feature == img[:, :-1]).
    w0_pad = jnp.zeros((HID, DATA_DIM), jnp.float32).at[:, :DATA_DIM - 1].set(p["w0"])
    whead = jnp.concatenate([p["wd0"][:, :FEA], p["wf"]], axis=0)   # [33, 8]
    bhead = jnp.concatenate([p["bd0"], p["bf"]], axis=0)            # [33]

    w8 = jnp.zeros((_W8_ROWS, DATA_DIM), jnp.float32)
    w8 = w8.at[_W8_W0:_W8_W0 + HID].set(w0_pad)
    w8 = w8.at[_W8_WD0I:_W8_WD0I + HID].set(p["wd0"][:, FEA:])
    w8 = w8.at[_W8_HEAD:_W8_HEAD + HID + 1].set(whead)

    w32 = jnp.zeros((_W32_ROWS, HID), jnp.float32)
    w32 = w32.at[_W32_W1:_W32_W1 + FEA].set(p["w1"])
    w32 = w32.at[_W32_WD1:_W32_WD1 + HID].set(p["wd1"])
    w32 = w32.at[_W32_WD2:_W32_WD2 + 1].set(p["wd2"])

    bias = jnp.zeros((_B_ROWS, 1), jnp.float32)
    bias = bias.at[_B_B0:_B_B0 + HID, 0].set(p["b0"])
    bias = bias.at[_B_B1:_B_B1 + FEA, 0].set(p["b1"])
    bias = bias.at[_B_BD1:_B_BD1 + HID, 0].set(p["bd1"])
    bias = bias.at[_B_BD2:_B_BD2 + 1, 0].set(p["bd2"])
    bias = bias.at[_B_HEAD:_B_HEAD + HID + 1, 0].set(bhead)
    return w8, w32, bias


def discriminator_forward(img, params, tile_b=1024):
    B = img.shape[0]

    # Batch tile: multiple of 128 lanes, capped by tile_b; prefer >= 2 grid
    # steps so v7x's two TensorCores both get work on larger batches.
    tile = _round_up(min(tile_b, _round_up(B, 128)), 128)
    if _round_up(B, tile) // tile < 2 and tile >= 256:
        tile = _round_up(tile // 2, 128)
    Bp = _round_up(B, tile)

    # Layout plumbing in the wrapper: feature-major, batch padded to Bp.
    img_t = jnp.pad(jnp.transpose(img).astype(jnp.float32),
                    ((0, 0), (0, Bp - B)))
    w8, w32, bias = pack_params(params)

    # Mem-bound kernel; tell XLA roughly what it moves/computes.
    flops = 4200 * Bp
    bytes_accessed = (DATA_DIM + 2) * 4 * Bp + 4 * (w8.size + w32.size + bias.size)

    x_t, y_t = pl.pallas_call(
        discriminator_kernel,
        out_shape=(jax.ShapeDtypeStruct((1, Bp), jnp.float32),
                   jax.ShapeDtypeStruct((1, Bp), jnp.float32)),
        grid=(Bp // tile,),
        in_specs=[
            pl.BlockSpec((DATA_DIM, tile), lambda i: (0, i)),
            pl.BlockSpec(w8.shape, lambda i: (0, 0)),
            pl.BlockSpec(w32.shape, lambda i: (0, 0)),
            pl.BlockSpec(bias.shape, lambda i: (0, 0)),
        ],
        out_specs=[
            pl.BlockSpec((1, tile), lambda i: (0, i)),
            pl.BlockSpec((1, tile), lambda i: (0, i)),
        ],
        compiler_params=pltpu.CompilerParams(dimension_semantics=("parallel",)),
        cost_estimate=pl.CostEstimate(flops=flops, transcendentals=0,
                                      bytes_accessed=bytes_accessed),
    )(img_t, w8, w32, bias)

    x = jnp.transpose(x_t[:, :B])     # [B, 1]
    y = jnp.transpose(y_t[:, :B])     # [B, 1]
    last_col = img[:, -1]             # [B]
    return x, last_col, y


def reference_forward(img, p):
    def lrelu(v):
        return jnp.where(v > 0, v, NEG_SLOPE * v)
    h = lrelu(img[:, :-1] @ p["w0"].T + p["b0"])
    fea = lrelu(h @ p["w1"].T + p["b1"])
    y = fea @ p["wf"].T + p["bf"]
    cat = jnp.concatenate((fea, img), axis=1)
    d = lrelu(cat @ p["wd0"].T + p["bd0"])
    d = lrelu(d @ p["wd1"].T + p["bd1"])
    x = d @ p["wd2"].T + p["bd2"]
    return x, img[:, -1], y


def _check(B, key_img, params, tile_b=1024):
    img = jax.random.normal(key_img, (B, DATA_DIM), jnp.float32)
    x, last, y = discriminator_forward(img, params, tile_b=tile_b)
    jax.block_until_ready((x, last, y))
    xr, lastr, yr = reference_forward(img, params)
    assert x.shape == (B, 1) and y.shape == (B, 1) and last.shape == (B,)
    assert jnp.allclose(x, xr, atol=1e-5, rtol=1e-5), "x mismatch"
    assert jnp.allclose(y, yr, atol=1e-5, rtol=1e-5), "y mismatch"
    assert jnp.allclose(last, lastr), "last-column mismatch"


if __name__ == "__main__":
    key = jax.random.PRNGKey(0)
    k_img1, k_img2, k_param = jax.random.split(key, 3)
    params = make_params(k_param)

    # small single-tile batch
    _check(16, k_img1, params)
    # non-multiple batch exercising padding + a 2-step ("parallel") grid
    _check(300, k_img2, params)

    print("KERNEL_OK")
</pallas_src>

<mosaic_0001>
module attributes {stable_mosaic.version = 11 : i64} {
  func.func @discriminator_kernel(%arg0: i32, %arg1: memref<8x128xf32, #tpu.memory_space<vmem>>, %arg2: memref<104x8xf32, #tpu.memory_space<vmem>>, %arg3: memref<48x32xf32, #tpu.memory_space<vmem>>, %arg4: memref<120x1xf32, #tpu.memory_space<vmem>>, %arg5: memref<1x128xf32, #tpu.memory_space<vmem>>, %arg6: memref<1x128xf32, #tpu.memory_space<vmem>>) attributes {dimension_semantics = [#tpu.dimension_semantics<parallel>], iteration_bounds = array<i64: 1>, scalar_prefetch = 0 : i64, scratch_operands = 0 : i64, tpu.core_type = #tpu.core_type<tc>, window_params = [{transform_indices = @transform_0, window_bounds = array<i64: 8, 128>}, {pipeline_mode = #tpu.pipeline_mode<synchronous>, transform_indices = @transform_1, window_bounds = array<i64: 104, 8>}, {pipeline_mode = #tpu.pipeline_mode<synchronous>, transform_indices = @transform_2, window_bounds = array<i64: 48, 32>}, {pipeline_mode = #tpu.pipeline_mode<synchronous>, transform_indices = @transform_3, window_bounds = array<i64: 120, 1>}, {transform_indices = @transform_4, window_bounds = array<i64: 1, 128>}, {transform_indices = @transform_5, window_bounds = array<i64: 1, 128>}]} {
    %c0 = arith.constant 0 : index
    %c0_0 = arith.constant 0 : index
    %0 = vector.load %arg1[%c0, %c0_0] : memref<8x128xf32, #tpu.memory_space<vmem>>, vector<8x128xf32>
    %c0_1 = arith.constant 0 : index
    %c0_2 = arith.constant 0 : index
    %1 = vector.load %arg2[%c0_1, %c0_2] : memref<104x8xf32, #tpu.memory_space<vmem>>, vector<32x8xf32>
    %cst = arith.constant dense<0.000000e+00> : vector<32x128xf32>
    %2 = tpu.matmul %1, %0, %cst {dimension_numbers = #tpu.dot_dimension_numbers<[1], [0], [0], [1], [0, 0, 1, 1], [], []>} : vector<32x8xf32>, vector<8x128xf32>, vector<32x128xf32> -> vector<32x128xf32>
    %c0_3 = arith.constant 0 : index
    %c0_4 = arith.constant 0 : index
    %3 = vector.load %arg4[%c0_3, %c0_4] : memref<120x1xf32, #tpu.memory_space<vmem>>, vector<32x1xf32>
    %4 = vector.broadcast %3 : vector<32x1xf32> to vector<32x128xf32>
    %5 = arith.addf %2, %4 : vector<32x128xf32>
    %cst_5 = arith.constant 0.000000e+00 : f32
    %6 = vector.broadcast %cst_5 : f32 to vector<32x128xf32>
    %7 = arith.cmpf ogt, %5, %6 : vector<32x128xf32>
    %cst_6 = arith.constant 0.00999999977 : f32
    %8 = vector.broadcast %cst_6 : f32 to vector<32x128xf32>
    %9 = arith.mulf %8, %5 : vector<32x128xf32>
    %10 = arith.select %7, %5, %9 : vector<32x128xi1>, vector<32x128xf32>
    %c0_7 = arith.constant 0 : index
    %c0_8 = arith.constant 0 : index
    %11 = vector.load %arg3[%c0_7, %c0_8] : memref<48x32xf32, #tpu.memory_space<vmem>>, vector<8x32xf32>
    %cst_9 = arith.constant dense<0.000000e+00> : vector<8x128xf32>
    %12 = tpu.matmul %11, %10, %cst_9 {dimension_numbers = #tpu.dot_dimension_numbers<[1], [0], [0], [1], [0, 0, 1, 1], [], []>} : vector<8x32xf32>, vector<32x128xf32>, vector<8x128xf32> -> vector<8x128xf32>
    %c32 = arith.constant 32 : index
    %c0_10 = arith.constant 0 : index
    %13 = vector.load %arg4[%c32, %c0_10] : memref<120x1xf32, #tpu.memory_space<vmem>>, vector<8x1xf32>
    %14 = vector.broadcast %13 : vector<8x1xf32> to vector<8x128xf32>
    %15 = arith.addf %12, %14 : vector<8x128xf32>
    %cst_11 = arith.constant 0.000000e+00 : f32
    %16 = vector.broadcast %cst_11 : f32 to vector<8x128xf32>
    %17 = arith.cmpf ogt, %15, %16 : vector<8x128xf32>
    %cst_12 = arith.constant 0.00999999977 : f32
    %18 = vector.broadcast %cst_12 : f32 to vector<8x128xf32>
    %19 = arith.mulf %18, %15 : vector<8x128xf32>
    %20 = arith.select %17, %15, %19 : vector<8x128xi1>, vector<8x128xf32>
    %c64 = arith.constant 64 : index
    %c0_13 = arith.constant 0 : index
    %21 = vector.load %arg2[%c64, %c0_13] : memref<104x8xf32, #tpu.memory_space<vmem>>, vector<33x8xf32>
    %cst_14 = arith.constant dense<0.000000e+00> : vector<33x128xf32>
    %22 = tpu.matmul %21, %20, %cst_14 {dimension_numbers = #tpu.dot_dimension_numbers<[1], [0], [0], [1], [0, 0, 1, 1], [], []>} : vector<33x8xf32>, vector<8x128xf32>, vector<33x128xf32> -> vector<33x128xf32>
    %c80 = arith.constant 80 : index
    %c0_15 = arith.constant 0 : index
    %23 = vector.load %arg4[%c80, %c0_15] : memref<120x1xf32, #tpu.memory_space<vmem>>, vector<33x1xf32>
    %24 = vector.broadcast %23 : vector<33x1xf32> to vector<33x128xf32>
    %25 = arith.addf %22, %24 : vector<33x128xf32>
    %26 = vector.extract_strided_slice %25 {offsets = [32, 0], sizes = [1, 128], strides = [1, 1]} : vector<33x128xf32> to vector<1x128xf32>
    %c0_16 = arith.constant 0 : index
    %c0_17 = arith.constant 0 : index
    %27 = vector.load %arg6[%c0_16, %c0_17] : memref<1x128xf32, #tpu.memory_space<vmem>>, vector<1x128xf32>
    tpu.vector_store %arg6[%c0_16, %c0_17], %26 {strides = array<i32>} : memref<1x128xf32, #tpu.memory_space<vmem>>, vector<1x128xf32>,
    %28 = vector.extract_strided_slice %25 {offsets = [0, 0], sizes = [32, 128], strides = [1, 1]} : vector<33x128xf32> to vector<32x128xf32>
    %c32_18 = arith.constant 32 : index
    %c0_19 = arith.constant 0 : index
    %29 = vector.load %arg2[%c32_18, %c0_19] : memref<104x8xf32, #tpu.memory_space<vmem>>, vector<32x8xf32>
    %cst_20 = arith.constant dense<0.000000e+00> : vector<32x128xf32>
    %30 = tpu.matmul %29, %0, %cst_20 {dimension_numbers = #tpu.dot_dimension_numbers<[1], [0], [0], [1], [0, 0, 1, 1], [], []>} : vector<32x8xf32>, vector<8x128xf32>, vector<32x128xf32> -> vector<32x128xf32>
    %31 = arith.addf %28, %30 : vector<32x128xf32>
    %cst_21 = arith.constant 0.000000e+00 : f32
    %32 = vector.broadcast %cst_21 : f32 to vector<32x128xf32>
    %33 = arith.cmpf ogt, %31, %32 : vector<32x128xf32>
    %cst_22 = arith.constant 0.00999999977 : f32
    %34 = vector.broadcast %cst_22 : f32 to vector<32x128xf32>
    %35 = arith.mulf %34, %31 : vector<32x128xf32>
    %36 = arith.select %33, %31, %35 : vector<32x128xi1>, vector<32x128xf32>
    %c8 = arith.constant 8 : index
    %c0_23 = arith.constant 0 : index
    %37 = vector.load %arg3[%c8, %c0_23] : memref<48x32xf32, #tpu.memory_space<vmem>>, vector<32x32xf32>
    %cst_24 = arith.constant dense<0.000000e+00> : vector<32x128xf32>
    %38 = tpu.matmul %37, %36, %cst_24 {dimension_numbers = #tpu.dot_dimension_numbers<[1], [0], [0], [1], [0, 0, 1, 1], [], []>} : vector<32x32xf32>, vector<32x128xf32>, vector<32x128xf32> -> vector<32x128xf32>
    %c40 = arith.constant 40 : index
    %c0_25 = arith.constant 0 : index
    %39 = vector.load %arg4[%c40, %c0_25] : memref<120x1xf32, #tpu.memory_space<vmem>>, vector<32x1xf32>
    %40 = vector.broadcast %39 : vector<32x1xf32> to vector<32x128xf32>
    %41 = arith.addf %38, %40 : vector<32x128xf32>
    %cst_26 = arith.constant 0.000000e+00 : f32
    %42 = vector.broadcast %cst_26 : f32 to vector<32x128xf32>
    %43 = arith.cmpf ogt, %41, %42 : vector<32x128xf32>
    %cst_27 = arith.constant 0.00999999977 : f32
    %44 = vector.broadcast %cst_27 : f32 to vector<32x128xf32>
    %45 = arith.mulf %44, %41 : vector<32x128xf32>
    %46 = arith.select %43, %41, %45 : vector<32x128xi1>, vector<32x128xf32>
    %c40_28 = arith.constant 40 : index
    %c0_29 = arith.constant 0 : index
    %47 = vector.load %arg3[%c40_28, %c0_29] : memref<48x32xf32, #tpu.memory_space<vmem>>, vector<1x32xf32>
    %cst_30 = arith.constant dense<0.000000e+00> : vector<1x128xf32>
    %48 = tpu.matmul %47, %46, %cst_30 {dimension_numbers = #tpu.dot_dimension_numbers<[1], [0], [0], [1], [0, 0, 1, 1], [], []>} : vector<1x32xf32>, vector<32x128xf32>, vector<1x128xf32> -> vector<1x128xf32>
    %c72 = arith.constant 72 : index
    %c0_31 = arith.constant 0 : index
    %49 = vector.load %arg4[%c72, %c0_31] : memref<120x1xf32, #tpu.memory_space<vmem>>, vector<1x1xf32>
    %50 = vector.broadcast %49 : vector<1x1xf32> to vector<1x128xf32>
    %51 = arith.addf %48, %50 : vector<1x128xf32>
    %c0_32 = arith.constant 0 : index
    %c0_33 = arith.constant 0 : index
    %52 = vector.load %arg5[%c0_32, %c0_33] : memref<1x128xf32, #tpu.memory_space<vmem>>, vector<1x128xf32>
    tpu.vector_store %arg5[%c0_32, %c0_33], %51 {strides = array<i32>} : memref<1x128xf32, #tpu.memory_space<vmem>>, vector<1x128xf32>,
    return
  }
  func.func @transform_0(%arg0: i32) -> (i32, i32) {
    %c0_i32 = arith.constant 0 : i32
    %c0_i32_0 = arith.constant 0 : i32
    return %c0_i32, %arg0 : i32, i32
  }
  func.func @transform_1(%arg0: i32) -> (i32, i32) {
    %c0_i32 = arith.constant 0 : i32
    %c0_i32_0 = arith.constant 0 : i32
    %c0_i32_1 = arith.constant 0 : i32
    return %c0_i32, %c0_i32_0 : i32, i32
  }
  func.func @transform_2(%arg0: i32) -> (i32, i32) {
    %c0_i32 = arith.constant 0 : i32
    %c0_i32_0 = arith.constant 0 : i32
    %c0_i32_1 = arith.constant 0 : i32
    return %c0_i32, %c0_i32_0 : i32, i32
  }
  func.func @transform_3(%arg0: i32) -> (i32, i32) {
    %c0_i32 = arith.constant 0 : i32
    %c0_i32_0 = arith.constant 0 : i32
    %c0_i32_1 = arith.constant 0 : i32
    return %c0_i32, %c0_i32_0 : i32, i32
  }
  func.func @transform_4(%arg0: i32) -> (i32, i32) {
    %c0_i32 = arith.constant 0 : i32
    %c0_i32_0 = arith.constant 0 : i32
    return %c0_i32, %arg0 : i32, i32
  }
  func.func @transform_5(%arg0: i32) -> (i32, i32) {
    %c0_i32 = arith.constant 0 : i32
    %c0_i32_0 = arith.constant 0 : i32
    return %c0_i32, %arg0 : i32, i32
  }
}

</mosaic_0001>

<llo_original>
// kernel: tpu_custom_call.1
$region0: #{tpu_custom_call.1}
  #allocation0 [shape = 'u32[]', space=smem, size = 0x4, offset = 0x4, fixed_abs, tag = 'smem constant byte address 0x4 - core index']
  #allocation1 [shape = 'u32[144,128]{1,0:T(1,128)}', space=vmem, size = 0x12000, scoped, tag = 'internal scratch']
  %s0 = inlined_call_operand.vmem [shape: f32[8,128], index: 0, kind: input, shape index: {}]
  %s1 = inlined_call_operand.vmem [shape: f32[104,8], index: 1, kind: input, shape index: {}]
  %s2 = inlined_call_operand.vmem [shape: f32[48,32], index: 2, kind: input, shape index: {}]
  %s3 = inlined_call_operand.vmem [shape: f32[120,1], index: 3, kind: input, shape index: {}]
  %s4 = inlined_call_operand.hbm [shape: f32[1,128], index: 4, kind: output, shape index: {0}]
  %s5 = inlined_call_operand.hbm [shape: f32[1,128], index: 5, kind: output, shape index: {1}]
  %6 = xla_tuple %s4, %s5
  %s7 = sld [smem:[#allocation0]]
  $region34: #{tpu_custom_call.1} parent=0
    _
  %s9 = ssub.s32 1, %s7
  %s10 = scalar_select 0, %s9, %s7
  $region1: #{tpu_custom_call.1} parent=0
    #allocation2 [shape = 'u8[512]{0}', space=vmem, size = 0x400, scoped, tag = 'output window, operand 0, single buffered']
    #allocation3 [shape = 's32[1]{0}', space=sflag, size = 0x4, scoped, tag = 'scoped memory for tpu_custom_call.1']
    #allocation4 [shape = 'u8[512]{0}', space=vmem, size = 0x400, scoped, tag = 'output window, operand 1, single buffered']
    #allocation5 [shape = 's32[1]{0}', space=sflag, size = 0x4, scoped, tag = 'scoped memory for tpu_custom_call.1']
    %11 = vsyncpa [#allocation3], 0
    %12 = vsyncpa [#allocation5], 0
    // Predicated region
    $region2: #{tpu_custom_call.1} parent=1 // pred_check
      _
    $region3: #{tpu_custom_call.1} parent=1 // pred_check_branch
      %14 = sbr.rel (0) target = $region5
    $region4: #{tpu_custom_call.1} parent=1 // pred_region
      _
    $region5: #{tpu_custom_call.1} parent=1 // pred_fallthru
      _
    // Predicated region
    $region6: #{tpu_custom_call.1} parent=1 // pred_check
      _
    $region7: #{tpu_custom_call.1} parent=1 // pred_check_branch
      %16 = sbr.rel (0) target = $region9
    $region8: #{tpu_custom_call.1} parent=1 // pred_region
      _
    $region9: #{tpu_custom_call.1} parent=1 // pred_fallthru
      _
    // Predicated region
    $region10: #{tpu_custom_call.1} parent=1 // pred_check
      _
    $region11: #{tpu_custom_call.1} parent=1 // pred_check_branch
      %18 = sbr.rel (0) target = $region13
    $region12: #{tpu_custom_call.1} parent=1 // pred_region
      _
    $region13: #{tpu_custom_call.1} parent=1 // pred_fallthru
      _
    // Predicated region
    $region14: #{tpu_custom_call.1} parent=1 // pred_check
      _
    $region15: #{tpu_custom_call.1} parent=1 // pred_check_branch
      %20 = sbr.rel (0) target = $region17
    $region16: #{tpu_custom_call.1} parent=1 // pred_region
      _
    $region17: #{tpu_custom_call.1} parent=1 // pred_fallthru
      _
    %v21 = vld [vmem:[%s0] sm:$0xff]
    %v22 = vld [vmem:[%s1] sm:$0xff]
    %v23 = vld [vmem:[%s1 + $0x8] sm:$0xff]
    %v24 = vld [vmem:[%s1 + $0x10] sm:$0xff]
    %v25 = vld [vmem:[%s1 + $0x18] sm:$0xff]
    %v26 = vld [vmem:[%s3] sm:$0xff]
    %v27 = vld [vmem:[%s3 + $0x8] sm:$0xff]
    %v28 = vld [vmem:[%s3 + $0x10] sm:$0xff]
    %v29 = vld [vmem:[%s3 + $0x18] sm:$0xff]
    %31 = vset.pattern.permute.xlu0 0
    %32 = vperm.xlu0 %31, %v26
    %v33 = vpop.permute.xlu0 %32
    %36 = vset.pattern.permute.xlu0 0
    %37 = vperm.xlu0 %36, %v27
    %v38 = vpop.permute.xlu0 %37
    %41 = vset.pattern.permute.xlu0 0
    %42 = vperm.xlu0 %41, %v28
    %v43 = vpop.permute.xlu0 %42
    %46 = vset.pattern.permute.xlu0 0
    %47 = vperm.xlu0 %46, %v29
    %v48 = vpop.permute.xlu0 %47
    %vm50 = vcmask 64512
    %v52 = vsel %vm50, %v22, 0
    %v55 = vsel %vm50, %v23, 0
    %v58 = vsel %vm50, %v24, 0
    %v61 = vsel %vm50, %v25, 0
    %63 = vmatprep.subr.mxu0 0.0
    %64 = vmatpush1.msra.mxu0 %v21
    %65 = vmatprep.subr.mxu0 0.0
    %66 = vmatpush1.msra.mxu0 0.0
    %67 = vmatprep.subr.mxu0 0.0
    %68 = vmatpush1.msra.mxu0 0.0
    %69 = vmatprep.subr.mxu0 0.0
    %70 = vmatpush1.msra.mxu0 0.0
    %71 = vmatprep.subr.mxu0 0.0
    %72 = vmatpush1.msra.mxu0 0.0
    %73 = vmatprep.subr.mxu0 0.0
    %74 = vmatpush1.msra.mxu0 0.0
    %75 = vmatprep.subr.mxu0 0.0
    %76 = vmatpush1.msra.mxu0 0.0
    %77 = vmatprep.subr.mxu0 0.0
    %78 = vmatpush1.msra.mxu0 0.0
    %79 = vmatprep.subr.mxu0 0.0
    %80 = vmatpush1.msra.mxu0 0.0
    %81 = vmatprep.subr.mxu0 0.0
    %82 = vmatpush1.msra.mxu0 0.0
    %83 = vmatprep.subr.mxu0 0.0
    %84 = vmatpush1.msra.mxu0 0.0
    %85 = vmatprep.subr.mxu0 0.0
    %86 = vmatpush1.msra.mxu0 0.0
    %87 = vmatprep.subr.mxu0 0.0
    %88 = vmatpush1.msra.mxu0 0.0
    %89 = vmatprep.subr.mxu0 0.0
    %90 = vmatpush1.msra.mxu0 0.0
    %91 = vmatprep.subr.mxu0 0.0
    %92 = vmatpush1.msra.mxu0 0.0
    %93 = vmatprep.subr.mxu0 0.0
    %94 = vmatpush1.msra.mxu0 0.0
    %95 = vmatprep.subr.mxu0 0.0
    %96 = vmatpush1.msra.mxu0 0.0
    %97 = vmatprep.subr.mxu0 0.0
    %98 = vmatpush1.msra.mxu0 0.0
    %99 = vmatprep.subr.mxu0 0.0
    %100 = vmatpush1.msra.mxu0 0.0
    %101 = vmatprep.subr.mxu0 0.0
    %102 = vmatpush1.msra.mxu0 0.0
    %103 = vmatprep.subr.mxu0 0.0
    %104 = vmatpush1.msra.mxu0 0.0
    %105 = vmatprep.subr.mxu0 0.0
    %106 = vmatpush1.msra.mxu0 0.0
    %107 = vmatprep.subr.mxu0 0.0
    %108 = vmatpush1.msra.mxu0 0.0
    %109 = vmatprep.subr.mxu0 0.0
    %110 = vmatpush1.msra.mxu0 0.0
    %111 = vmatprep.subr.mxu0 0.0
    %112 = vmatpush1.msra.mxu0 0.0
    %113 = vmatprep.subr.mxu0 0.0
    %114 = vmatpush1.msra.mxu0 0.0
    %115 = vmatprep.subr.mxu0 0.0
    %116 = vmatpush1.msra.mxu0 0.0
    %117 = vmatprep.subr.mxu0 0.0
    %118 = vmatpush1.msra.mxu0 0.0
    %119 = vmatprep.subr.mxu0 0.0
    %120 = vmatpush1.msra.mxu0 0.0
    %121 = vmatprep.subr.mxu0 0.0
    %122 = vmatpush1.msra.mxu0 0.0
    %123 = vmatprep.subr.mxu0 0.0
    %124 = vmatpush1.msra.mxu0 0.0
    %125 = vmatprep.subr.mxu0 0.0
    %126 = vmatpush1.msra.mxu0 0.0
    %127 = vmatprep.mubr.f32.mxu0 0.0
    %128 = vmatmul.mubr.f32.gmra.mrb[0].mxu0 %v52
    %v129 = vpop.f32.mrb[0].mxu0
    %v130 = vadd.f32 %v33, %v129
    %v131 = vpop.f32.mrb[0].mxu0
    %132 = vmatprep.mubr.f32.mxu0 0.0
    %133 = vmatmul.mubr.f32.gmra.mrb[0].mxu0 %v55
    %v134 = vpop.f32.mrb[0].mxu0
    %v135 = vadd.f32 %v38, %v134
    %v136 = vpop.f32.mrb[0].mxu0
    %137 = vmatprep.mubr.f32.mxu0 0.0
    %138 = vmatmul.mubr.f32.gmra.mrb[0].mxu0 %v58
    %v139 = vpop.f32.mrb[0].mxu0
    %v140 = vadd.f32 %v43, %v139
    %v141 = vpop.f32.mrb[0].mxu0
    %142 = vmatprep.mubr.f32.mxu0 0.0
    %143 = vmatmul.mubr.f32.gmra.mrb[0].mxu0 %v61
    %v144 = vpop.f32.mrb[0].mxu0
    %v145 = vadd.f32 %v48, %v144
    %v146 = vpop.f32.mrb[0].mxu0
    %147 = vdwg.mxu0
    %vm148 = vcmp.gt.f32.partialorder %v130, 0.0
    %vm149 = vcmp.gt.f32.partialorder %v135, 0.0
    %vm150 = vcmp.gt.f32.partialorder %v140, 0.0
    %vm151 = vcmp.gt.f32.partialorder %v145, 0.0
    %v152 = vmul.f32 %v130, 0.01
    %v153 = vmul.f32 %v135, 0.01
    %v154 = vmul.f32 %v140, 0.01
    %v155 = vmul.f32 %v145, 0.01
    %v156 = vsel %vm148, %v130, %v152
    %v157 = vsel %vm149, %v135, %v153
    %v158 = vsel %vm150, %v140, %v154
    %v159 = vsel %vm151, %v145, %v155
    %v160 = vld [vmem:[%s2] sm:$0xff]
    %v161 = vld [vmem:[%s3 + $0x20] sm:$0xff]
    %163 = vset.pattern.permute.xlu0 0
    %164 = vperm.xlu0 %163, %v161
    %v165 = vpop.permute.xlu0 %164
    %vm167 = vcmask 261120
    %v169 = vsel %vm167, %v160, 0
    %171 = vmatprep.subr.mxu0 0.0
    %172 = vmatpush1.msra.mxu0 %v156
    %173 = vmatprep.subr.mxu0 0.0
    %174 = vmatpush1.msra.mxu0 %v157
    %175 = vmatprep.subr.mxu0 0.0
    %176 = vmatpush1.msra.mxu0 %v158
    %177 = vmatprep.subr.mxu0 0.0
    %178 = vmatpush1.msra.mxu0 %v159
    %179 = vmatprep.subr.mxu0 0.0
    %180 = vmatpush1.msra.mxu0 0.0
    %181 = vmatprep.subr.mxu0 0.0
    %182 = vmatpush1.msra.mxu0 0.0
    %183 = vmatprep.subr.mxu0 0.0
    %184 = vmatpush1.msra.mxu0 0.0
    %185 = vmatprep.subr.mxu0 0.0
    %186 = vmatpush1.msra.mxu0 0.0
    %187 = vmatprep.subr.mxu0 0.0
    %188 = vmatpush1.msra.mxu0 0.0
    %189 = vmatprep.subr.mxu0 0.0
    %190 = vmatpush1.msra.mxu0 0.0
    %191 = vmatprep.subr.mxu0 0.0
    %192 = vmatpush1.msra.mxu0 0.0
    %193 = vmatprep.subr.mxu0 0.0
    %194 = vmatpush1.msra.mxu0 0.0
    %195 = vmatprep.subr.mxu0 0.0
    %196 = vmatpush1.msra.mxu0 0.0
    %197 = vmatprep.subr.mxu0 0.0
    %198 = vmatpush1.msra.mxu0 0.0
    %199 = vmatprep.subr.mxu0 0.0
    %200 = vmatpush1.msra.mxu0 0.0
    %201 = vmatprep.subr.mxu0 0.0
    %202 = vmatpush1.msra.mxu0 0.0
    %203 = vmatprep.subr.mxu0 0.0
    %204 = vmatpush1.msra.mxu0 0.0
    %205 = vmatprep.subr.mxu0 0.0
    %206 = vmatpush1.msra.mxu0 0.0
    %207 = vmatprep.subr.mxu0 0.0
    %208 = vmatpush1.msra.mxu0 0.0
    %209 = vmatprep.subr.mxu0 0.0
    %210 = vmatpush1.msra.mxu0 0.0
    %211 = vmatprep.subr.mxu0 0.0
    %212 = vmatpush1.msra.mxu0 0.0
    %213 = vmatprep.subr.mxu0 0.0
    %214 = vmatpush1.msra.mxu0 0.0
    %215 = vmatprep.subr.mxu0 0.0
    %216 = vmatpush1.msra.mxu0 0.0
    %217 = vmatprep.subr.mxu0 0.0
    %218 = vmatpush1.msra.mxu0 0.0
    %219 = vmatprep.subr.mxu0 0.0
    %220 = vmatpush1.msra.mxu0 0.0
    %221 = vmatprep.subr.mxu0 0.0
    %222 = vmatpush1.msra.mxu0 0.0
    %223 = vmatprep.subr.mxu0 0.0
    %224 = vmatpush1.msra.mxu0 0.0
    %225 = vmatprep.subr.mxu0 0.0
    %226 = vmatpush1.msra.mxu0 0.0
    %227 = vmatprep.subr.mxu0 0.0
    %228 = vmatpush1.msra.mxu0 0.0
    %229 = vmatprep.subr.mxu0 0.0
    %230 = vmatpush1.msra.mxu0 0.0
    %231 = vmatprep.subr.mxu0 0.0
    %232 = vmatpush1.msra.mxu0 0.0
    %233 = vmatprep.subr.mxu0 0.0
    %234 = vmatpush1.msra.mxu0 0.0
    %235 = vmatprep.mubr.f32.mxu0 0.0
    %236 = vmatmul.mubr.f32.gmra.mrb[0].mxu0 %v169
    %v237 = vpop.f32.mrb[0].mxu0
    %v238 = vadd.f32 %v165, %v237
    %v239 = vpop.f32.mrb[0].mxu0
    %240 = vdwg.mxu0
    %vm241 = vcmp.gt.f32.partialorder %v238, 0.0
    %v242 = vmul.f32 %v238, 0.01
    %v243 = vsel %vm241, %v238, %v242
    %v244 = vld [vmem:[%s1 + $0x40] sm:$0xff]
    %v245 = vld [vmem:[%s1 + $0x48] sm:$0xff]
    %v246 = vld [vmem:[%s1 + $0x50] sm:$0xff]
    %v247 = vld [vmem:[%s1 + $0x58] sm:$0xff]
    %v248 = vld [vmem:[%s1 + $0x60] sm:$0x1]
    %v249 = vld [vmem:[%s3 + $0x50] sm:$0xff]
    %v250 = vld [vmem:[%s3 + $0x58] sm:$0xff]
    %v251 = vld [vmem:[%s3 + $0x60] sm:$0xff]
    %v252 = vld [vmem:[%s3 + $0x68] sm:$0xff]
    %v253 = vld [vmem:[%s3 + $0x70] sm:$0x1]
    %255 = vset.pattern.permute.xlu0 0
    %256 = vperm.xlu0 %255, %v249
    %v257 = vpop.permute.xlu0 %256
    %260 = vset.pattern.permute.xlu0 0
    %261 = vperm.xlu0 %260, %v250
    %v262 = vpop.permute.xlu0 %261
    %265 = vset.pattern.permute.xlu0 0
    %266 = vperm.xlu0 %265, %v251
    %v267 = vpop.permute.xlu0 %266
    %270 = vset.pattern.permute.xlu0 0
    %271 = vperm.xlu0 %270, %v252
    %v272 = vpop.permute.xlu0 %271
    %275 = vset.pattern.permute.xlu0 0
    %276 = vperm.xlu0 %275, %v253
    %v277 = vpop.permute.xlu0 %276
    %v280 = vsel %vm50, %v244, 0
    %v283 = vsel %vm50, %v245, 0
    %v286 = vsel %vm50, %v246, 0
    %v289 = vsel %vm50, %v247, 0
    %v292 = vsel %vm50, %v248, 0
    %294 = vmatprep.subr.mxu0 0.0
    %295 = vmatpush1.msra.mxu0 %v243
    %296 = vmatprep.subr.mxu0 0.0
    %297 = vmatpush1.msra.mxu0 0.0
    %298 = vmatprep.subr.mxu0 0.0
    %299 = vmatpush1.msra.mxu0 0.0
    %300 = vmatprep.subr.mxu0 0.0
    %301 = vmatpush1.msra.mxu0 0.0
    %302 = vmatprep.subr.mxu0 0.0
    %303 = vmatpush1.msra.mxu0 0.0
    %304 = vmatprep.subr.mxu0 0.0
    %305 = vmatpush1.msra.mxu0 0.0
    %306 = vmatprep.subr.mxu0 0.0
    %307 = vmatpush1.msra.mxu0 0.0
    %308 = vmatprep.subr.mxu0 0.0
    %309 = vmatpush1.msra.mxu0 0.0
    %310 = vmatprep.subr.mxu0 0.0
    %311 = vmatpush1.msra.mxu0 0.0
    %312 = vmatprep.subr.mxu0 0.0
    %313 = vmatpush1.msra.mxu0 0.0
    %314 = vmatprep.subr.mxu0 0.0
    %315 = vmatpush1.msra.mxu0 0.0
    %316 = vmatprep.subr.mxu0 0.0
    %317 = vmatpush1.msra.mxu0 0.0
    %318 = vmatprep.subr.mxu0 0.0
    %319 = vmatpush1.msra.mxu0 0.0
    %320 = vmatprep.subr.mxu0 0.0
    %321 = vmatpush1.msra.mxu0 0.0
    %322 = vmatprep.subr.mxu0 0.0
    %323 = vmatpush1.msra.mxu0 0.0
    %324 = vmatprep.subr.mxu0 0.0
    %325 = vmatpush1.msra.mxu0 0.0
    %326 = vmatprep.subr.mxu0 0.0
    %327 = vmatpush1.msra.mxu0 0.0
    %328 = vmatprep.subr.mxu0 0.0
    %329 = vmatpush1.msra.mxu0 0.0
    %330 = vmatprep.subr.mxu0 0.0
    %331 = vmatpush1.msra.mxu0 0.0
    %332 = vmatprep.subr.mxu0 0.0
    %333 = vmatpush1.msra.mxu0 0.0
    %334 = vmatprep.subr.mxu0 0.0
    %335 = vmatpush1.msra.mxu0 0.0
    %336 = vmatprep.subr.mxu0 0.0
    %337 = vmatpush1.msra.mxu0 0.0
    %338 = vmatprep.subr.mxu0 0.0
    %339 = vmatpush1.msra.mxu0 0.0
    %340 = vmatprep.subr.mxu0 0.0
    %341 = vmatpush1.msra.mxu0 0.0
    %342 = vmatprep.subr.mxu0 0.0
    %343 = vmatpush1.msra.mxu0 0.0
    %344 = vmatprep.subr.mxu0 0.0
    %345 = vmatpush1.msra.mxu0 0.0
    %346 = vmatprep.subr.mxu0 0.0
    %347 = vmatpush1.msra.mxu0 0.0
    %348 = vmatprep.subr.mxu0 0.0
    %349 = vmatpush1.msra.mxu0 0.0
    %350 = vmatprep.subr.mxu0 0.0
    %351 = vmatpush1.msra.mxu0 0.0
    %352 = vmatprep.subr.mxu0 0.0
    %353 = vmatpush1.msra.mxu0 0.0
    %354 = vmatprep.subr.mxu0 0.0
    %355 = vmatpush1.msra.mxu0 0.0
    %356 = vmatprep.subr.mxu0 0.0
    %357 = vmatpush1.msra.mxu0 0.0
    %358 = vmatprep.mubr.f32.mxu0 0.0
    %359 = vmatmul.mubr.f32.gmra.mrb[0].mxu0 %v280
    %v360 = vpop.f32.mrb[0].mxu0
    %v361 = vadd.f32 %v257, %v360
    %v362 = vpop.f32.mrb[0].mxu0
    %363 = vmatprep.mubr.f32.mxu0 0.0
    %364 = vmatmul.mubr.f32.gmra.mrb[0].mxu0 %v283
    %v365 = vpop.f32.mrb[0].mxu0
    %v366 = vadd.f32 %v262, %v365
    %v367 = vpop.f32.mrb[0].mxu0
    %368 = vmatprep.mubr.f32.mxu0 0.0
    %369 = vmatmul.mubr.f32.gmra.mrb[0].mxu0 %v286
    %v370 = vpop.f32.mrb[0].mxu0
    %v371 = vadd.f32 %v267, %v370
    %v372 = vpop.f32.mrb[0].mxu0
    %373 = vmatprep.mubr.f32.mxu0 0.0
    %374 = vmatmul.mubr.f32.gmra.mrb[0].mxu0 %v289
    %v375 = vpop.f32.mrb[0].mxu0
    %v376 = vadd.f32 %v272, %v375
    %v377 = vpop.f32.mrb[0].mxu0
    %378 = vmatprep.mubr.f32.mxu0 0.0
    %379 = vmatmul.mubr.f32.gmra.mrb[0].mxu0 %v292
    %v380 = vpop.f32.mrb[0].mxu0
    %v381 = vadd.f32 %v277, %v380
    %v382 = vpop.f32.mrb[0].mxu0
    %383 = vdwg.mxu0
    %384 = vst [vmem:[#allocation4] sm:$0x1] %v381
    %v385 = vld [vmem:[%s1 + $0x20] sm:$0xff]
    %v386 = vld [vmem:[%s1 + $0x28] sm:$0xff]
    %v387 = vld [vmem:[%s1 + $0x30] sm:$0xff]
    %v388 = vld [vmem:[%s1 + $0x38] sm:$0xff]
    %v390 = vsel %vm50, %v385, 0
    %v393 = vsel %vm50, %v386, 0
    %v396 = vsel %vm50, %v387, 0
    %v399 = vsel %vm50, %v388, 0
    %401 = vmatprep.subr.mxu0 0.0
    %402 = vmatpush1.msra.mxu0 %v21
    %403 = vmatprep.subr.mxu0 0.0
    %404 = vmatpush1.msra.mxu0 0.0
    %405 = vmatprep.subr.mxu0 0.0
    %406 = vmatpush1.msra.mxu0 0.0
    %407 = vmatprep.subr.mxu0 0.0
    %408 = vmatpush1.msra.mxu0 0.0
    %409 = vmatprep.subr.mxu0 0.0
    %410 = vmatpush1.msra.mxu0 0.0
    %411 = vmatprep.subr.mxu0 0.0
    %412 = vmatpush1.msra.mxu0 0.0
    %413 = vmatprep.subr.mxu0 0.0
    %414 = vmatpush1.msra.mxu0 0.0
    %415 = vmatprep.subr.mxu0 0.0
    %416 = vmatpush1.msra.mxu0 0.0
    %417 = vmatprep.subr.mxu0 0.0
    %418 = vmatpush1.msra.mxu0 0.0
    %419 = vmatprep.subr.mxu0 0.0
    %420 = vmatpush1.msra.mxu0 0.0
    %421 = vmatprep.subr.mxu0 0.0
    %422 = vmatpush1.msra.mxu0 0.0
    %423 = vmatprep.subr.mxu0 0.0
    %424 = vmatpush1.msra.mxu0 0.0
    %425 = vmatprep.subr.mxu0 0.0
    %426 = vmatpush1.msra.mxu0 0.0
    %427 = vmatprep.subr.mxu0 0.0
    %428 = vmatpush1.msra.mxu0 0.0
    %429 = vmatprep.subr.mxu0 0.0
    %430 = vmatpush1.msra.mxu0 0.0
    %431 = vmatprep.subr.mxu0 0.0
    %432 = vmatpush1.msra.mxu0 0.0
    %433 = vmatprep.subr.mxu0 0.0
    %434 = vmatpush1.msra.mxu0 0.0
    %435 = vmatprep.subr.mxu0 0.0
    %436 = vmatpush1.msra.mxu0 0.0
    %437 = vmatprep.subr.mxu0 0.0
    %438 = vmatpush1.msra.mxu0 0.0
    %439 = vmatprep.subr.mxu0 0.0
    %440 = vmatpush1.msra.mxu0 0.0
    %441 = vmatprep.subr.mxu0 0.0
    %442 = vmatpush1.msra.mxu0 0.0
    %443 = vmatprep.subr.mxu0 0.0
    %444 = vmatpush1.msra.mxu0 0.0
    %445 = vmatprep.subr.mxu0 0.0
    %446 = vmatpush1.msra.mxu0 0.0
    %447 = vmatprep.subr.mxu0 0.0
    %448 = vmatpush1.msra.mxu0 0.0
    %449 = vmatprep.subr.mxu0 0.0
    %450 = vmatpush1.msra.mxu0 0.0
    %451 = vmatprep.subr.mxu0 0.0
    %452 = vmatpush1.msra.mxu0 0.0
    %453 = vmatprep.subr.mxu0 0.0
    %454 = vmatpush1.msra.mxu0 0.0
    %455 = vmatprep.subr.mxu0 0.0
    %456 = vmatpush1.msra.mxu0 0.0
    %457 = vmatprep.subr.mxu0 0.0
    %458 = vmatpush1.msra.mxu0 0.0
    %459 = vmatprep.subr.mxu0 0.0
    %460 = vmatpush1.msra.mxu0 0.0
    %461 = vmatprep.subr.mxu0 0.0
    %462 = vmatpush1.msra.mxu0 0.0
    %463 = vmatprep.subr.mxu0 0.0
    %464 = vmatpush1.msra.mxu0 0.0
    %465 = vmatprep.mubr.f32.mxu0 0.0
    %466 = vmatmul.mubr.f32.gmra.mrb[0].mxu0 %v390
    %v467 = vpop.f32.mrb[0].mxu0
    %v468 = vadd.f32 0.0, %v467
    %v469 = vpop.f32.mrb[0].mxu0
    %470 = vmatprep.mubr.f32.mxu0 0.0
    %471 = vmatmul.mubr.f32.gmra.mrb[0].mxu0 %v393
    %v472 = vpop.f32.mrb[0].mxu0
    %v473 = vadd.f32 0.0, %v472
    %v474 = vpop.f32.mrb[0].mxu0
    %475 = vmatprep.mubr.f32.mxu0 0.0
    %476 = vmatmul.mubr.f32.gmra.mrb[0].mxu0 %v396
    %v477 = vpop.f32.mrb[0].mxu0
    %v478 = vadd.f32 0.0, %v477
    %v479 = vpop.f32.mrb[0].mxu0
    %480 = vmatprep.mubr.f32.mxu0 0.0
    %481 = vmatmul.mubr.f32.gmra.mrb[0].mxu0 %v399
    %v482 = vpop.f32.mrb[0].mxu0
    %v483 = vadd.f32 0.0, %v482
    %v484 = vpop.f32.mrb[0].mxu0
    %485 = vdwg.mxu0
    %v486 = vadd.f32 %v361, %v468
    %v487 = vadd.f32 %v366, %v473
    %v488 = vadd.f32 %v371, %v478
    %v489 = vadd.f32 %v376, %v483
    %vm490 = vcmp.gt.f32.partialorder %v486, 0.0
    %vm491 = vcmp.gt.f32.partialorder %v487, 0.0
    %vm492 = vcmp.gt.f32.partialorder %v488, 0.0
    %vm493 = vcmp.gt.f32.partialorder %v489, 0.0
    %v494 = vmul.f32 %v486, 0.01
    %v495 = vmul.f32 %v487, 0.01
    %v496 = vmul.f32 %v488, 0.01
    %v497 = vmul.f32 %v489, 0.01
    %v498 = vsel %vm490, %v486, %v494
    %v499 = vsel %vm491, %v487, %v495
    %v500 = vsel %vm492, %v488, %v496
    %v501 = vsel %vm493, %v489, %v497
    %v502 = vld [vmem:[%s2 + $0x8] sm:$0xff]
    %v503 = vld [vmem:[%s2 + $0x10] sm:$0xff]
    %v504 = vld [vmem:[%s2 + $0x18] sm:$0xff]
    %v505 = vld [vmem:[%s2 + $0x20] sm:$0xff]
    %v506 = vld [vmem:[%s3 + $0x28] sm:$0xff]
    %v507 = vld [vmem:[%s3 + $0x30] sm:$0xff]
    %v508 = vld [vmem:[%s3 + $0x38] sm:$0xff]
    %v509 = vld [vmem:[%s3 + $0x40] sm:$0xff]
    %511 = vset.pattern.permute.xlu0 0
    %512 = vperm.xlu0 %511, %v506
    %v513 = vpop.permute.xlu0 %512
    %516 = vset.pattern.permute.xlu0 0
    %517 = vperm.xlu0 %516, %v507
    %v518 = vpop.permute.xlu0 %517
    %521 = vset.pattern.permute.xlu0 0
    %522 = vperm.xlu0 %521, %v508
    %v523 = vpop.permute.xlu0 %522
    %526 = vset.pattern.permute.xlu0 0
    %527 = vperm.xlu0 %526, %v509
    %v528 = vpop.permute.xlu0 %527
    %v531 = vsel %vm167, %v502, 0
    %v534 = vsel %vm167, %v503, 0
    %v537 = vsel %vm167, %v504, 0
    %v540 = vsel %vm167, %v505, 0
    %542 = vmatprep.subr.mxu0 0.0
    %543 = vmatpush1.msra.mxu0 %v498
    %544 = vmatprep.subr.mxu0 0.0
    %545 = vmatpush1.msra.mxu0 %v499
    %546 = vmatprep.subr.mxu0 0.0
    %547 = vmatpush1.msra.mxu0 %v500
    %548 = vmatprep.subr.mxu0 0.0
    %549 = vmatpush1.msra.mxu0 %v501
    %550 = vmatprep.subr.mxu0 0.0
    %551 = vmatpush1.msra.mxu0 0.0
    %552 = vmatprep.subr.mxu0 0.0
    %553 = vmatpush1.msra.mxu0 0.0
    %554 = vmatprep.subr.mxu0 0.0
    %555 = vmatpush1.msra.mxu0 0.0
    %556 = vmatprep.subr.mxu0 0.0
    %557 = vmatpush1.msra.mxu0 0.0
    %558 = vmatprep.subr.mxu0 0.0
    %559 = vmatpush1.msra.mxu0 0.0
    %560 = vmatprep.subr.mxu0 0.0
    %561 = vmatpush1.msra.mxu0 0.0
    %562 = vmatprep.subr.mxu0 0.0
    %563 = vmatpush1.msra.mxu0 0.0
    %564 = vmatprep.subr.mxu0 0.0
    %565 = vmatpush1.msra.mxu0 0.0
    %566 = vmatprep.subr.mxu0 0.0
    %567 = vmatpush1.msra.mxu0 0.0
    %568 = vmatprep.subr.mxu0 0.0
    %569 = vmatpush1.msra.mxu0 0.0
    %570 = vmatprep.subr.mxu0 0.0
    %571 = vmatpush1.msra.mxu0 0.0
    %572 = vmatprep.subr.mxu0 0.0
    %573 = vmatpush1.msra.mxu0 0.0
    %574 = vmatprep.subr.mxu0 0.0
    %575 = vmatpush1.msra.mxu0 0.0
    %576 = vmatprep.subr.mxu0 0.0
    %577 = vmatpush1.msra.mxu0 0.0
    %578 = vmatprep.subr.mxu0 0.0
    %579 = vmatpush1.msra.mxu0 0.0
    %580 = vmatprep.subr.mxu0 0.0
    %581 = vmatpush1.msra.mxu0 0.0
    %582 = vmatprep.subr.mxu0 0.0
    %583 = vmatpush1.msra.mxu0 0.0
    %584 = vmatprep.subr.mxu0 0.0
    %585 = vmatpush1.msra.mxu0 0.0
    %586 = vmatprep.subr.mxu0 0.0
    %587 = vmatpush1.msra.mxu0 0.0
    %588 = vmatprep.subr.mxu0 0.0
    %589 = vmatpush1.msra.mxu0 0.0
    %590 = vmatprep.subr.mxu0 0.0
    %591 = vmatpush1.msra.mxu0 0.0
    %592 = vmatprep.subr.mxu0 0.0
    %593 = vmatpush1.msra.mxu0 0.0
    %594 = vmatprep.subr.mxu0 0.0
    %595 = vmatpush1.msra.mxu0 0.0
    %596 = vmatprep.subr.mxu0 0.0
    %597 = vmatpush1.msra.mxu0 0.0
    %598 = vmatprep.subr.mxu0 0.0
    %599 = vmatpush1.msra.mxu0 0.0
    %600 = vmatprep.subr.mxu0 0.0
    %601 = vmatpush1.msra.mxu0 0.0
    %602 = vmatprep.subr.mxu0 0.0
    %603 = vmatpush1.msra.mxu0 0.0
    %604 = vmatprep.subr.mxu0 0.0
    %605 = vmatpush1.msra.mxu0 0.0
    %606 = vmatprep.mubr.f32.mxu0 0.0
    %607 = vmatmul.mubr.f32.gmra.mrb[0].mxu0 %v531
    %v608 = vpop.f32.mrb[0].mxu0
    %v609 = vadd.f32 %v513, %v608
    %v610 = vpop.f32.mrb[0].mxu0
    %611 = vmatprep.mubr.f32.mxu0 0.0
    %612 = vmatmul.mubr.f32.gmra.mrb[0].mxu0 %v534
    %v613 = vpop.f32.mrb[0].mxu0
    %v614 = vadd.f32 %v518, %v613
    %v615 = vpop.f32.mrb[0].mxu0
    %616 = vmatprep.mubr.f32.mxu0 0.0
    %617 = vmatmul.mubr.f32.gmra.mrb[0].mxu0 %v537
    %v618 = vpop.f32.mrb[0].mxu0
    %v619 = vadd.f32 %v523, %v618
    %v620 = vpop.f32.mrb[0].mxu0
    %621 = vmatprep.mubr.f32.mxu0 0.0
    %622 = vmatmul.mubr.f32.gmra.mrb[0].mxu0 %v540
    %v623 = vpop.f32.mrb[0].mxu0
    %v624 = vadd.f32 %v528, %v623
    %v625 = vpop.f32.mrb[0].mxu0
    %626 = vdwg.mxu0
    %vm627 = vcmp.gt.f32.partialorder %v609, 0.0
    %vm628 = vcmp.gt.f32.partialorder %v614, 0.0
    %vm629 = vcmp.gt.f32.partialorder %v619, 0.0
    %vm630 = vcmp.gt.f32.partialorder %v624, 0.0
    %v631 = vmul.f32 %v609, 0.01
    %v632 = vmul.f32 %v614, 0.01
    %v633 = vmul.f32 %v619, 0.01
    %v634 = vmul.f32 %v624, 0.01
    %v635 = vsel %vm627, %v609, %v631
    %v636 = vsel %vm628, %v614, %v632
    %v637 = vsel %vm629, %v619, %v633
    %v638 = vsel %vm630, %v624, %v634
    %v639 = vld [vmem:[%s2 + $0x28] sm:$0x1]
    %v640 = vld [vmem:[%s3 + $0x48] sm:$0x1]
    %642 = vset.pattern.permute.xlu0 0
    %643 = vperm.xlu0 %642, %v640
    %v644 = vpop.permute.xlu0 %643
    %v647 = vsel %vm167, %v639, 0
    %649 = vmatprep.subr.mxu0 0.0
    %650 = vmatpush1.msra.mxu0 %v635
    %651 = vmatprep.subr.mxu0 0.0
    %652 = vmatpush1.msra.mxu0 %v636
    %653 = vmatprep.subr.mxu0 0.0
    %654 = vmatpush1.msra.mxu0 %v637
    %655 = vmatprep.subr.mxu0 0.0
    %656 = vmatpush1.msra.mxu0 %v638
    %657 = vmatprep.subr.mxu0 0.0
    %658 = vmatpush1.msra.mxu0 0.0
    %659 = vmatprep.subr.mxu0 0.0
    %660 = vmatpush1.msra.mxu0 0.0
    %661 = vmatprep.subr.mxu0 0.0
    %662 = vmatpush1.msra.mxu0 0.0
    %663 = vmatprep.subr.mxu0 0.0
    %664 = vmatpush1.msra.mxu0 0.0
    %665 = vmatprep.subr.mxu0 0.0
    %666 = vmatpush1.msra.mxu0 0.0
    %667 = vmatprep.subr.mxu0 0.0
    %668 = vmatpush1.msra.mxu0 0.0
    %669 = vmatprep.subr.mxu0 0.0
    %670 = vmatpush1.msra.mxu0 0.0
    %671 = vmatprep.subr.mxu0 0.0
    %672 = vmatpush1.msra.mxu0 0.0
    %673 = vmatprep.subr.mxu0 0.0
    %674 = vmatpush1.msra.mxu0 0.0
    %675 = vmatprep.subr.mxu0 0.0
    %676 = vmatpush1.msra.mxu0 0.0
    %677 = vmatprep.subr.mxu0 0.0
    %678 = vmatpush1.msra.mxu0 0.0
    %679 = vmatprep.subr.mxu0 0.0
    %680 = vmatpush1.msra.mxu0 0.0
    %681 = vmatprep.subr.mxu0 0.0
    %682 = vmatpush1.msra.mxu0 0.0
    %683 = vmatprep.subr.mxu0 0.0
    %684 = vmatpush1.msra.mxu0 0.0
    %685 = vmatprep.subr.mxu0 0.0
    %686 = vmatpush1.msra.mxu0 0.0
    %687 = vmatprep.subr.mxu0 0.0
    %688 = vmatpush1.msra.mxu0 0.0
    %689 = vmatprep.subr.mxu0 0.0
    %690 = vmatpush1.msra.mxu0 0.0
    %691 = vmatprep.subr.mxu0 0.0
    %692 = vmatpush1.msra.mxu0 0.0
    %693 = vmatprep.subr.mxu0 0.0
    %694 = vmatpush1.msra.mxu0 0.0
    %695 = vmatprep.subr.mxu0 0.0
    %696 = vmatpush1.msra.mxu0 0.0
    %697 = vmatprep.subr.mxu0 0.0
    %698 = vmatpush1.msra.mxu0 0.0
    %699 = vmatprep.subr.mxu0 0.0
    %700 = vmatpush1.msra.mxu0 0.0
    %701 = vmatprep.subr.mxu0 0.0
    %702 = vmatpush1.msra.mxu0 0.0
    %703 = vmatprep.subr.mxu0 0.0
    %704 = vmatpush1.msra.mxu0 0.0
    %705 = vmatprep.subr.mxu0 0.0
    %706 = vmatpush1.msra.mxu0 0.0
    %707 = vmatprep.subr.mxu0 0.0
    %708 = vmatpush1.msra.mxu0 0.0
    %709 = vmatprep.subr.mxu0 0.0
    %710 = vmatpush1.msra.mxu0 0.0
    %711 = vmatprep.subr.mxu0 0.0
    %712 = vmatpush1.msra.mxu0 0.0
    %713 = vmatprep.mubr.f32.mxu0 0.0
    %714 = vmatmul.mubr.f32.gmra.mrb[0].mxu0 %v647
    %v715 = vpop.f32.mrb[0].mxu0
    %v716 = vadd.f32 %v644, %v715
    %v717 = vpop.f32.mrb[0].mxu0
    %718 = vdwg.mxu0
    %719 = vst [vmem:[#allocation2] sm:$0x1] %v716
    // Predicated region
    $region18: #{tpu_custom_call.1} parent=1 // pred_check
      _
    $region19: #{tpu_custom_call.1} parent=1 // pred_check_branch
      %721 = sbr.rel (0) target = $region21
    $region20: #{tpu_custom_call.1} parent=1 // pred_region
      %s723 = ssub.s32 16, 16
      %724 = vsyncadd [#allocation3], %s723
      %s726 = sshll.u32 [#allocation2], 4
      %s727 = int_to_ptr.vmem [resolvable:$true] %s726
      %729 = dma.vmem_to_hbm [thread:$0]  %s727, 16, %s4, [#allocation3]
    $region21: #{tpu_custom_call.1} parent=1 // pred_fallthru
      _
    // Predicated region
    $region22: #{tpu_custom_call.1} parent=1 // pred_check
      _
    $region23: #{tpu_custom_call.1} parent=1 // pred_check_branch
      %731 = sbr.rel (0) target = $region25
    $region24: #{tpu_custom_call.1} parent=1 // pred_region
      %s733 = ssub.s32 16, 16
      %734 = vsyncadd [#allocation5], %s733
      %s736 = sshll.u32 [#allocation4], 4
      %s737 = int_to_ptr.vmem [resolvable:$true] %s736
      %739 = dma.vmem_to_hbm [thread:$0]  %s737, 16, %s5, [#allocation5]
    $region25: #{tpu_custom_call.1} parent=1 // pred_fallthru
      _
    // Predicated region
    $region26: #{tpu_custom_call.1} parent=1 // pred_check
      _
    $region27: #{tpu_custom_call.1} parent=1 // pred_check_branch
      %741 = sbr.rel (0) target = $region29
    $region28: #{tpu_custom_call.1} parent=1 // pred_region
      %742 = dma.done [#allocation3], 16
    $region29: #{tpu_custom_call.1} parent=1 // pred_fallthru
      _
    // Predicated region
    $region30: #{tpu_custom_call.1} parent=1 // pred_check
      _
    $region31: #{tpu_custom_call.1} parent=1 // pred_check_branch
      %744 = sbr.rel (0) target = $region33
    $region32: #{tpu_custom_call.1} parent=1 // pred_region
      %745 = dma.done [#allocation5], 16
    $region33: #{tpu_custom_call.1} parent=1 // pred_fallthru
      _
    %746 = vsyncpa [#allocation3], 1
    %747 = vsyncpa [#allocation5], 1

</llo_original>
